<compile_context>
chip_gen: v7x
topology: tpu7x:2x2x1
jax: 0.10.0
libtpu: 0.0.40
codegen_flags: <defaults>
</compile_context>

<pallas_src>
import functools

import jax
import jax.numpy as jnp
from jax import lax
from jax.experimental import pallas as pl
from jax.experimental.pallas import tpu as pltpu


def _round_up(x: int, m: int) -> int:
    return ((x + m - 1) // m) * m


def _min_sublane(arr) -> int:
    # Min second-minor tile per dtype: f32 -> 8, bf16/f16 -> 16, int8/fp8 -> 32.
    return max(8, 32 // arr.dtype.itemsize)


def _cauchy_kernel(yh_ref, y_ref, out_ref, acc_ref, *,
                   tile_m, valid_rows, needs_mask):
    c = pl.program_id(0)          # TensorCore (parallel) axis
    i = pl.program_id(1)          # sequential reduction axis (row tiles per core)

    @pl.when(i == 0)
    def _init():
        acc_ref[...] = jnp.zeros_like(acc_ref)

    d = yh_ref[...].astype(jnp.float32) - y_ref[...].astype(jnp.float32)
    v = jnp.log(1.0 + d * d)      # literal torch formula (log1p would be more
                                  # accurate for tiny residuals; keep parity).
    # TODO(synk): if jnp.log lowers to a VPU polynomial (EUP has no native ln),
    # v7x may become VALU-bound; the 2-core split above covers that case.

    def _fold(vals):
        # (tile_m, lanes) -> (8, lanes): rows 8 apart share a sublane position,
        # so this is a layout-trivial regroup + plain vreg adds (no relayout).
        tm, ln = vals.shape
        return jnp.sum(vals.reshape(tm // 8, 8, ln), axis=0)

    if needs_mask:
        # Only the globally-last block can extend past the valid data rows.
        is_ragged = jnp.logical_and(c == pl.num_programs(0) - 1,
                                    i == pl.num_programs(1) - 1)

        @pl.when(is_ragged)
        def _masked():
            base = (c * pl.num_programs(1) + i) * tile_m
            row = base + lax.broadcasted_iota(jnp.int32, v.shape, 0)
            acc_ref[...] += _fold(jnp.where(row < valid_rows, v, 0.0))

        @pl.when(jnp.logical_not(is_ragged))
        def _unmasked():
            acc_ref[...] += _fold(v)
    else:
        acc_ref[...] += _fold(v)

    @pl.when(i == pl.num_programs(1) - 1)
    def _finalize():
        # Single cross-lane/sublane reduce per core, then the wrapper divides
        # the summed partials by the true element count.
        out_ref[...] = jnp.sum(acc_ref[...]).reshape(1, 1, 1)


def cauchy_loss(y_hat, y, *, block_bytes=4 * 1024 * 1024, lanes=None,
                num_cores=2, vmem_limit_bytes=32 * 1024 * 1024):
    """mean(log(1 + (y_hat - y)^2)) as a Pallas TPU streaming reduction.

    block_bytes ~4 MiB per input per grid step fits everywhere; on v5e/v6e
    (128 MiB VMEM) block_bytes=8 MiB with vmem_limit_bytes~48-64 MiB is also
    safe.  num_cores=2 engages the v7x megacore split; it runs serially (and
    correctly) on single-TensorCore chips.
    """
    assert y_hat.shape == y.shape, (y_hat.shape, y.shape)
    n = y_hat.size
    assert n > 0, "CauchyLoss of an empty tensor"
    if lanes is not None:
        assert lanes % 128 == 0, lanes

    out_dtype = jnp.promote_types(y_hat.dtype, y.dtype)
    sub = max(_min_sublane(y_hat), _min_sublane(y))
    itemsize = max(y_hat.dtype.itemsize, y.dtype.itemsize)

    yh = y_hat.reshape(-1)
    yy = y.reshape(-1)

    # ---- lane width: prefer a width that makes the flat->2D reshape free -----
    pad_to = None
    if lanes is None:
        for cand in (1024, 512, 256, 128):
            if n % (cand * sub) == 0:          # sublane-aligned rows, zero copies
                lanes = cand
                break
        else:
            for cand in (1024, 512, 256, 128):
                if n % cand == 0:              # ragged rows, still zero copies
                    lanes = cand
                    break
    if lanes is None or n % lanes != 0:
        # TODO(synk): sizes not divisible by 128 still take one jnp.pad copy; a
        # 1-D ragged-block (or wrapper tail-sum) path would remove it too.
        lanes = lanes or 1024
        rows = _round_up(pl.cdiv(n, lanes), sub)
        pad_to = rows * lanes
    else:
        rows = n // lanes

    # ---- row-block size (~block_bytes per input per grid step) ---------------
    tile_m = max(sub, (block_bytes // (lanes * itemsize)) // sub * sub)
    tile_m = min(tile_m, _round_up(rows, sub))
    if tile_m > rows:
        # Tiny input: one block taller than the data; pad the slab to one block.
        rows = tile_m
        pad_to = rows * lanes
    total_tiles = pl.cdiv(rows, tile_m)

    # ---- 2-TensorCore split (v7x megacore); serial & harmless on 1-TC chips --
    num_cores_eff = num_cores if (num_cores > 1 and total_tiles >= num_cores) else 1
    steps_per_core = pl.cdiv(total_tiles, num_cores_eff)
    if num_cores_eff > 1:
        # Tighten tile_m so the grid overshoots the data by less than one block
        # (never a fully out-of-bounds DMA); otherwise fall back to one range.
        tile_m = max(sub, _round_up(pl.cdiv(rows, num_cores_eff * steps_per_core), sub))
        if (num_cores_eff * steps_per_core - 1) * tile_m >= rows:
            num_cores_eff = 1
            steps_per_core = pl.cdiv(rows, tile_m)

    rows_grid = num_cores_eff * steps_per_core * tile_m   # rows the grid covers
    needs_mask = rows_grid > rows      # only the globally-last block is ragged

    if pad_to is not None and pad_to != n:
        yh = jnp.pad(yh, (0, pad_to - n))   # zeros contribute log(1+0)=0
        yy = jnp.pad(yy, (0, pad_to - n))
    yh = yh.reshape(rows, lanes)
    yy = yy.reshape(rows, lanes)

    kernel = functools.partial(_cauchy_kernel, tile_m=tile_m,
                               valid_rows=rows, needs_mask=needs_mask)

    spc = steps_per_core  # captured by the index maps below
    in_spec = pl.BlockSpec((tile_m, lanes), lambda c, i: (c * spc + i, 0))

    partial_sums = pl.pallas_call(
        kernel,
        out_shape=jax.ShapeDtypeStruct((num_cores_eff, 1, 1), jnp.float32),
        grid_spec=pltpu.PrefetchScalarGridSpec(
            num_scalar_prefetch=0,
            grid=(num_cores_eff, steps_per_core),
            in_specs=[in_spec, in_spec],
            out_specs=pl.BlockSpec((1, 1, 1), lambda c, i: (c, 0, 0)),
            scratch_shapes=[pltpu.VMEM((8, lanes), jnp.float32)],
        ),
        compiler_params=pltpu.CompilerParams(
            dimension_semantics=("parallel", "arbitrary"),
            vmem_limit_bytes=vmem_limit_bytes,
        ),
    )(yh, yy)

    return (jnp.sum(partial_sums) / jnp.float32(n)).astype(out_dtype)


if __name__ == "__main__":
    key = jax.random.PRNGKey(0)
    k1, k2, k3, k4, k5, k6 = jax.random.split(key, 6)

    def ref_loss(a, b):
        return jnp.mean(jnp.log(1.0 + (a - b) ** 2))

    # 1) Module-shaped input (batch=2, channels=4, 16x16): aligned fast path
    #    (free reshape, no padding, no masking).
    B, C, H, W = 2, 4, 16, 16
    y_hat = jax.random.normal(k1, (B, C, H, W), dtype=jnp.float32)
    y = jax.random.normal(k2, (B, C, H, W), dtype=jnp.float32)
    loss = jax.block_until_ready(cauchy_loss(y_hat, y))
    ref = ref_loss(y_hat, y)
    assert jnp.allclose(loss, ref, rtol=1e-5, atol=1e-6), (loss, ref)

    # 2) Ragged row count: no jnp.pad copy, last block masked in-kernel.
    a = jax.random.normal(k3, (3, 11, 128), dtype=jnp.float32)
    b = jax.random.normal(k4, (3, 11, 128), dtype=jnp.float32)
    loss2 = jax.block_until_ready(cauchy_loss(a, b, block_bytes=4096))
    ref2 = ref_loss(a, b)
    assert jnp.allclose(loss2, ref2, rtol=1e-5, atol=1e-6), (loss2, ref2)

    # 3) Two-core parallel split (grid (2, steps)); runs serially on 1-TC chips.
    c1 = jax.random.normal(k5, (64, 128), dtype=jnp.float32)
    c2 = jax.random.normal(k6, (64, 128), dtype=jnp.float32)
    loss3 = jax.block_until_ready(cauchy_loss(c1, c2, block_bytes=16384, lanes=128))
    ref3 = ref_loss(c1, c2)
    assert jnp.allclose(loss3, ref3, rtol=1e-5, atol=1e-6), (loss3, ref3)

    print("KERNEL_OK")
</pallas_src>

<mosaic_0001>
module attributes {stable_mosaic.version = 11 : i64} {
  func.func @_cauchy_kernel(%arg0: i32, %arg1: i32, %arg2: memref<8x256xf32, #tpu.memory_space<vmem>>, %arg3: memref<8x256xf32, #tpu.memory_space<vmem>>, %arg4: memref<1x1x1xf32, #tpu.memory_space<vmem>>, %arg5: memref<8x256xf32, #tpu.memory_space<vmem>>) attributes {dimension_semantics = [#tpu.dimension_semantics<parallel>, #tpu.dimension_semantics<arbitrary>], iteration_bounds = array<i64: 1, 1>, scalar_prefetch = 0 : i64, scratch_operands = 1 : i64, tpu.core_type = #tpu.core_type<tc>, window_params = [{transform_indices = @transform_0, window_bounds = array<i64: 8, 256>}, {transform_indices = @transform_1, window_bounds = array<i64: 8, 256>}, {transform_indices = @transform_2, window_bounds = array<i64: 1, 1, 1>}]} {
    %c0_i32 = arith.constant 0 : i32
    %0 = arith.cmpi eq, %arg1, %c0_i32 : i32
    %1 = arith.extui %0 : i1 to i32
    %c0_i32_0 = arith.constant 0 : i32
    %2 = arith.cmpi ne, %1, %c0_i32_0 : i32
    scf.if %2 {
      %cst_11 = arith.constant 0.000000e+00 : f32
      %18 = vector.broadcast %cst_11 : f32 to vector<8x256xf32>
      %c0_12 = arith.constant 0 : index
      %c0_13 = arith.constant 0 : index
      %19 = vector.load %arg5[%c0_12, %c0_13] : memref<8x256xf32, #tpu.memory_space<vmem>>, vector<8x256xf32>
      tpu.vector_store %arg5[%c0_12, %c0_13], %18 {strides = array<i32>} : memref<8x256xf32, #tpu.memory_space<vmem>>, vector<8x256xf32>,
    } else {
    }
    %c0 = arith.constant 0 : index
    %c0_1 = arith.constant 0 : index
    %3 = vector.load %arg2[%c0, %c0_1] : memref<8x256xf32, #tpu.memory_space<vmem>>, vector<8x256xf32>
    %c0_2 = arith.constant 0 : index
    %c0_3 = arith.constant 0 : index
    %4 = vector.load %arg3[%c0_2, %c0_3] : memref<8x256xf32, #tpu.memory_space<vmem>>, vector<8x256xf32>
    %5 = arith.subf %3, %4 : vector<8x256xf32>
    %6 = arith.mulf %5, %5 : vector<8x256xf32>
    %cst = arith.constant 1.000000e+00 : f32
    %7 = vector.broadcast %cst : f32 to vector<8x256xf32>
    %8 = arith.addf %7, %6 : vector<8x256xf32>
    %9 = math.log %8 : vector<8x256xf32>
    %c0_4 = arith.constant 0 : index
    %c0_5 = arith.constant 0 : index
    %10 = vector.load %arg5[%c0_4, %c0_5] : memref<8x256xf32, #tpu.memory_space<vmem>>, vector<8x256xf32>
    %11 = vector.shape_cast %9 : vector<8x256xf32> to vector<1x8x256xf32>
    %cst_6 = arith.constant dense<0.000000e+00> : vector<8x256xf32>
    %12 = vector.multi_reduction <add>, %11, %cst_6 [0] : vector<1x8x256xf32> to vector<8x256xf32>
    %13 = arith.addf %10, %12 : vector<8x256xf32>
    %c0_7 = arith.constant 0 : index
    %c0_8 = arith.constant 0 : index
    %14 = vector.load %arg5[%c0_7, %c0_8] : memref<8x256xf32, #tpu.memory_space<vmem>>, vector<8x256xf32>
    tpu.vector_store %arg5[%c0_7, %c0_8], %13 {strides = array<i32>} : memref<8x256xf32, #tpu.memory_space<vmem>>, vector<8x256xf32>,
    %c0_i32_9 = arith.constant 0 : i32
    %15 = arith.cmpi eq, %arg1, %c0_i32_9 : i32
    %16 = arith.extui %15 : i1 to i32
    %c0_i32_10 = arith.constant 0 : i32
    %17 = arith.cmpi ne, %16, %c0_i32_10 : i32
    scf.if %17 {
      %c0_11 = arith.constant 0 : index
      %c0_12 = arith.constant 0 : index
      %18 = vector.load %arg5[%c0_11, %c0_12] : memref<8x256xf32, #tpu.memory_space<vmem>>, vector<8x256xf32>
      %19 = vector.shape_cast %18 : vector<8x256xf32> to vector<1x8x256xf32>
      %cst_13 = arith.constant dense<0.000000e+00> : vector<1xf32>
      %20 = vector.multi_reduction <add>, %19, %cst_13 [1, 2] : vector<1x8x256xf32> to vector<1xf32>
      %21 = vector.shape_cast %20 : vector<1xf32> to vector<1x1x1xf32>
      %22 = vector.extract %21[0, 0, 0] : f32 from vector<1x1x1xf32>
      %23 = vector.broadcast %22 : f32 to vector<1x1x1xf32>
      %c0_14 = arith.constant 0 : index
      %c0_15 = arith.constant 0 : index
      %c0_16 = arith.constant 0 : index
      %24 = vector.load %arg4[%c0_14, %c0_15, %c0_16] : memref<1x1x1xf32, #tpu.memory_space<vmem>>, vector<1x1x1xf32>
      tpu.vector_store %arg4[%c0_14, %c0_15, %c0_16], %23 {strides = array<i32>} : memref<1x1x1xf32, #tpu.memory_space<vmem>>, vector<1x1x1xf32>,
    } else {
    }
    return
  }
  func.func @transform_0(%arg0: i32, %arg1: i32) -> (i32, i32) {
    %c1_i32 = arith.constant 1 : i32
    %0 = arith.muli %arg0, %c1_i32 : i32
    %1 = arith.addi %0, %arg1 : i32
    %c0_i32 = arith.constant 0 : i32
    %c0_i32_0 = arith.constant 0 : i32
    return %1, %c0_i32 : i32, i32
  }
  func.func @transform_1(%arg0: i32, %arg1: i32) -> (i32, i32) {
    %c1_i32 = arith.constant 1 : i32
    %0 = arith.muli %arg0, %c1_i32 : i32
    %1 = arith.addi %0, %arg1 : i32
    %c0_i32 = arith.constant 0 : i32
    %c0_i32_0 = arith.constant 0 : i32
    return %1, %c0_i32 : i32, i32
  }
  func.func @transform_2(%arg0: i32, %arg1: i32) -> (i32, i32, i32) {
    %c0_i32 = arith.constant 0 : i32
    %c0_i32_0 = arith.constant 0 : i32
    %c0_i32_1 = arith.constant 0 : i32
    return %arg0, %c0_i32, %c0_i32_0 : i32, i32, i32
  }
}

</mosaic_0001>

<llo_original>
// kernel: tpu_custom_call.1
$region0: #{tpu_custom_call.1}
  #allocation0 [shape = 'u32[]', space=smem, size = 0x4, offset = 0x4, fixed_abs, tag = 'smem constant byte address 0x4 - core index']
  #allocation1 [shape = 'u32[144,128]{1,0:T(1,128)}', space=vmem, size = 0x12000, scoped, tag = 'internal scratch']
  #allocation2 [shape = 'f32[8,256]{1,0:T(8,128)}', space=vmem, size = 0x2000, scoped, tag = 'scratch operand']
  %s0 = inlined_call_operand.hbm [shape: f32[8,256], index: 0, kind: input, shape index: {}]
  %s1 = inlined_call_operand.hbm [shape: f32[8,256], index: 1, kind: input, shape index: {}]
  %s2 = inlined_call_operand.hbm [shape: f32[1,1,1], index: 2, kind: output, shape index: {}]
  %s3 = sld [smem:[#allocation0]]
  $region34: #{tpu_custom_call.1} parent=0
    _
  %s5 = ssub.s32 1, %s3
  %s6 = scalar_select 0, %s5, %s3
  $region1: #{tpu_custom_call.1} parent=0
    #allocation3 [shape = 'u8[8192]{0}', space=vmem, size = 0x2000, scoped, tag = 'input window, operand 0, single buffered']
    #allocation4 [shape = 's32[1]{0}', space=sflag, size = 0x4, scoped, tag = 'scoped memory for tpu_custom_call.1']
    #allocation5 [shape = 's32[1]{0}', space=sflag, size = 0x4, scoped, tag = 'scoped memory for tpu_custom_call.1']
    #allocation6 [shape = 'u8[8192]{0}', space=vmem, size = 0x2000, scoped, tag = 'input window, operand 1, single buffered']
    #allocation7 [shape = 's32[1]{0}', space=sflag, size = 0x4, scoped, tag = 'scoped memory for tpu_custom_call.1']
    #allocation8 [shape = 'u8[512]{0}', space=vmem, size = 0x400, scoped, tag = 'output window, operand 0, single buffered']
    %7 = vsyncpa [#allocation4], 0
    %8 = vsyncpa [#allocation7], 0
    %9 = vsyncpa [#allocation5], 0
    // Predicated region
    $region2: #{tpu_custom_call.1} parent=1 // pred_check
      _
    $region3: #{tpu_custom_call.1} parent=1 // pred_check_branch
      %11 = sbr.rel (0) target = $region5
    $region4: #{tpu_custom_call.1} parent=1 // pred_region
      %s12 = sadd.s32 0, 0
      %s14 = ssub.s32 256, 256
      %15 = vsyncadd [#allocation4], %s14
      %s16 = smul.addr %s12, 2
      %s17 = smul.addr %s16, 128
      %s18 = scalar_lea.hbm %s0, %s17
      %s20 = sshll.u32 [#allocation3], 4
      %s21 = int_to_ptr.vmem [resolvable:$true] %s20
      %23 = dma.hbm_to_vmem [thread:$0]  %s18, 256, %s21, [#allocation4]
    $region5: #{tpu_custom_call.1} parent=1 // pred_fallthru
      _
    // Predicated region
    $region6: #{tpu_custom_call.1} parent=1 // pred_check
      _
    $region7: #{tpu_custom_call.1} parent=1 // pred_check_branch
      %25 = sbr.rel (0) target = $region9
    $region8: #{tpu_custom_call.1} parent=1 // pred_region
      %s26 = sadd.s32 0, 0
      %s28 = ssub.s32 256, 256
      %29 = vsyncadd [#allocation7], %s28
      %s30 = smul.addr %s26, 2
      %s31 = smul.addr %s30, 128
      %s32 = scalar_lea.hbm %s1, %s31
      %s34 = sshll.u32 [#allocation6], 4
      %s35 = int_to_ptr.vmem [resolvable:$true] %s34
      %37 = dma.hbm_to_vmem [thread:$0]  %s32, 256, %s35, [#allocation7]
    $region9: #{tpu_custom_call.1} parent=1 // pred_fallthru
      _
    // Predicated region
    $region10: #{tpu_custom_call.1} parent=1 // pred_check
      _
    $region11: #{tpu_custom_call.1} parent=1 // pred_check_branch
      %39 = sbr.rel (0) target = $region13
    $region12: #{tpu_custom_call.1} parent=1 // pred_region
      %40 = dma.done [#allocation4], 256
    $region13: #{tpu_custom_call.1} parent=1 // pred_fallthru
      _
    // Predicated region
    $region14: #{tpu_custom_call.1} parent=1 // pred_check
      _
    $region15: #{tpu_custom_call.1} parent=1 // pred_check_branch
      %42 = sbr.rel (0) target = $region17
    $region16: #{tpu_custom_call.1} parent=1 // pred_region
      %43 = dma.done [#allocation7], 256
    $region17: #{tpu_custom_call.1} parent=1 // pred_fallthru
      _
    %s44 = sadd.s32 0, 0
    %s45 = sadd.s32 0, 0
    %p46 = scmp.eq.s32.totalorder 0, 0
    // Predicated region
    $region18: #{tpu_custom_call.1} parent=1 // pred_check
      %p47 = pneg %p46
    $region19: #{tpu_custom_call.1} parent=1 // pred_check_branch
      %49 = sbr.rel (%p47) target = $region21
    $region20: #{tpu_custom_call.1} parent=1 // pred_region
      %50 = vst [vmem:[#allocation2] sm:$0xff] 0.0
      %51 = vst [vmem:[#allocation2 + $0x8] sm:$0xff] 0.0
    $region21: #{tpu_custom_call.1} parent=1 // pred_fallthru
      _
    %v52 = vld [vmem:[#allocation3] sm:$0xff]
    %v53 = vld [vmem:[#allocation3 + $0x8] sm:$0xff]
    %v54 = vld [vmem:[#allocation6] sm:$0xff]
    %v55 = vld [vmem:[#allocation6 + $0x8] sm:$0xff]
    %v56 = vsub.f32 %v52, %v54
    %v57 = vsub.f32 %v53, %v55
    %v58 = vmul.f32 %v56, %v56
    %v59 = vmul.f32 %v57, %v57
    %v60 = vadd.f32 %v58, 1.0
    %v61 = vadd.f32 %v59, 1.0
    %v62 = vlog2.pop %v60
    %v63 = vmul.f32 %v62, 0.6931472
    %v64 = vlog2.pop %v61
    %v65 = vmul.f32 %v64, 0.6931472
    %v66 = vld [vmem:[#allocation2] sm:$0xff]
    %v67 = vld [vmem:[#allocation2 + $0x8] sm:$0xff]
    %v68 = vadd.f32 %v63, 0.0
    %v69 = vadd.f32 %v65, 0.0
    %v70 = vadd.f32 %v66, %v68
    %v71 = vadd.f32 %v67, %v69
    %72 = vst [vmem:[#allocation2] sm:$0xff] %v70
    %73 = vst [vmem:[#allocation2 + $0x8] sm:$0xff] %v71
    // Predicated region
    $region22: #{tpu_custom_call.1} parent=1 // pred_check
      %p74 = pneg %p46
    $region23: #{tpu_custom_call.1} parent=1 // pred_check_branch
      %76 = sbr.rel (%p74) target = $region25
    $region24: #{tpu_custom_call.1} parent=1 // pred_region
      %v77 = vld [vmem:[#allocation2] sm:$0xff]
      %v78 = vld [vmem:[#allocation2 + $0x8] sm:$0xff]
      %v79 = vadd.f32 %v77, %v78
      %80 = vadd.xlane.f32.xlu0 %v79
      %v81 = vpop.xlane.xlu0 %80
      %v82 = vrot.slane %v81, 4
      %v83 = vadd.f32 %v81, %v82
      %v84 = vrot.slane %v83, 2
      %v85 = vadd.f32 %v83, %v84
      %v86 = vrot.slane %v85, 1
      %v87 = vadd.f32 %v85, %v86
      %s88 = vtos %v87
      %v89 = vstv %s88
      %vm90 = vcmask 0
      %91 = vst.msk [vmem:[#allocation8] sm:$0x1] %vm90, %v89
    $region25: #{tpu_custom_call.1} parent=1 // pred_fallthru
      _
    // Predicated region
    $region26: #{tpu_custom_call.1} parent=1 // pred_check
      _
    $region27: #{tpu_custom_call.1} parent=1 // pred_check_branch
      %93 = sbr.rel (0) target = $region29
    $region28: #{tpu_custom_call.1} parent=1 // pred_region
      %s95 = ssub.s32 16, 16
      %96 = vsyncadd [#allocation5], %s95
      %s98 = sshll.u32 [#allocation8], 4
      %s99 = int_to_ptr.vmem [resolvable:$true] %s98
      %101 = dma.vmem_to_hbm [thread:$0]  %s99, 16, %s2, [#allocation5]
    $region29: #{tpu_custom_call.1} parent=1 // pred_fallthru
      _
    // Predicated region
    $region30: #{tpu_custom_call.1} parent=1 // pred_check
      _
    $region31: #{tpu_custom_call.1} parent=1 // pred_check_branch
      %103 = sbr.rel (0) target = $region33
    $region32: #{tpu_custom_call.1} parent=1 // pred_region
      %104 = dma.done [#allocation5], 16
    $region33: #{tpu_custom_call.1} parent=1 // pred_fallthru
      _
    %105 = vsyncpa [#allocation4], 1
    %106 = vsyncpa [#allocation7], 1
    %107 = vsyncpa [#allocation5], 1

</llo_original>
